<compile_context>
chip_gen: v7x
topology: tpu7x:2x2x1
jax: 0.10.0
libtpu: 0.0.40
codegen_flags: <defaults>
</compile_context>

<pallas_src>
import jax
import jax.numpy as jnp
from jax import lax
from jax.experimental import pallas as pl
from jax.experimental.pallas import tpu as pltpu


def image_encoder_kernel(x_ref, w_ref, b_ref, out_ref):
    """Fused: global avg-pool (squeeze) -> L2 norm -> Linear(bf16 MXU) -> L2 norm.

    x_ref   : [TB, HW, C] float32   (channels on lanes, spatial on sublanes)
    w_ref   : [C, D]      bfloat16  (projector weight, transposed vs. torch)
    b_ref   : [1, D]      float32   (projector bias)
    out_ref : [TB, D]     float32
    """
    eps = 1e-12  # torch F.normalize default eps

    x = x_ref[...]                                     # [TB, HW, C]
    # AdaptiveAvgPool2d((1,1)) + squeeze -> [TB, C]  (sublane reduce, lane-dense result)
    feats = jnp.mean(x, axis=1)

    # normf #1: rows / max(||row||_2, eps)  ==  rows * rsqrt(max(sum(row^2), eps^2))
    ssq1 = jnp.sum(feats * feats, axis=-1, keepdims=True)
    feats = feats * lax.rsqrt(jnp.maximum(ssq1, eps * eps))

    # projector: Linear(img_feat_dim, 2*rnn_dim) on the MXU in bf16, f32 accumulation
    proj = jnp.dot(
        feats.astype(jnp.bfloat16), w_ref[...],
        preferred_element_type=jnp.float32,
    ) + b_ref[...]

    # normf #2
    ssq2 = jnp.sum(proj * proj, axis=-1, keepdims=True)
    out_ref[...] = (proj * lax.rsqrt(jnp.maximum(ssq2, eps * eps))).astype(out_ref.dtype)


def image_encoder(images, w, b, *, tb=128):
    """images: [B, C, H, W] float32 (NCHW). w: [C, D]. b: [D]. Returns [B, D] float32."""
    B, C, H, W = images.shape
    HW = H * W
    D = w.shape[1]

    # Lane-dense layout: [B, HW, C] so channels map to the 128-lane axis.
    x = jnp.transpose(images, (0, 2, 3, 1)).reshape(B, HW, C).astype(jnp.float32)
    w_bf = w.astype(jnp.bfloat16)
    b2 = b.reshape(1, D).astype(jnp.float32)

    TB = min(tb, B)
    grid = (pl.cdiv(B, TB),)

    # Rough VMEM budget: double-buffered x/out blocks + resident weight/bias.
    vmem_needed = (2 * TB * HW * C * 4      # x blocks (f32)
                   + 2 * C * D * 2          # weight (bf16)
                   + 2 * D * 4              # bias
                   + 2 * TB * D * 4)        # out blocks (f32)
    vmem_limit = int(min(max(2 * vmem_needed, 32 << 20), 48 << 20))

    cost = pl.CostEstimate(
        flops=2 * B * C * D + B * HW * C,   # projection matmul + pooling adds
        transcendentals=2 * B,              # one rsqrt per row per norm
        bytes_accessed=B * HW * C * 4 + C * D * 2 + D * 4 + B * D * 4,
    )

    return pl.pallas_call(
        image_encoder_kernel,
        out_shape=jax.ShapeDtypeStruct((B, D), jnp.float32),
        grid=grid,
        in_specs=[
            pl.BlockSpec((TB, HW, C), lambda i: (i, 0, 0)),   # streamed batch tiles
            pl.BlockSpec((C, D), lambda i: (0, 0)),           # resident weight
            pl.BlockSpec((1, D), lambda i: (0, 0)),           # resident bias
        ],
        out_specs=pl.BlockSpec((TB, D), lambda i: (i, 0)),
        compiler_params=pltpu.CompilerParams(
            dimension_semantics=("parallel",),
            vmem_limit_bytes=vmem_limit,
        ),
        cost_estimate=cost,
    )(x, w_bf, b2)


def _reference(images, w, b):
    """Pure-JAX f32 reference (torch semantics) for correctness check."""
    eps = 1e-12
    B, C, H, W = images.shape
    feats = jnp.mean(images.reshape(B, C, H * W), axis=-1)
    feats = feats / jnp.maximum(jnp.linalg.norm(feats, axis=-1, keepdims=True), eps)
    proj = feats @ w + b[None, :]
    return proj / jnp.maximum(jnp.linalg.norm(proj, axis=-1, keepdims=True), eps)


if __name__ == "__main__":
    # Small, module-consistent shapes:
    #   batch B=16 (so tb=8 exercises a 2-step pipelined grid),
    #   img_feat_dim C=32 (ResNet feature channels), spatial 8x8,
    #   rnn_dim=16 -> projector out_dim = 2*rnn_dim = 32.
    B, C, H, W = 16, 32, 8, 8
    rnn_dim = 16
    out_dim = 2 * rnn_dim

    key = jax.random.PRNGKey(0)
    k_img, k_w, k_b = jax.random.split(key, 3)

    images = jax.random.normal(k_img, (B, C, H, W), dtype=jnp.float32)

    # Deterministic Xavier-uniform init for the projector (nn_init(projector, 'xavier')).
    limit = (6.0 / (C + out_dim)) ** 0.5
    w = jax.random.uniform(k_w, (C, out_dim), minval=-limit, maxval=limit,
                           dtype=jnp.float32)
    b = jax.random.uniform(k_b, (out_dim,), minval=-limit, maxval=limit,
                           dtype=jnp.float32)

    out = image_encoder(images, w, b, tb=8)
    out = jax.block_until_ready(out)

    ref = _reference(images, w, b)
    assert out.shape == (B, out_dim)
    # Tolerance loosened vs. the f32 reference because the projection runs in bf16 on the
    # MXU (f32 accumulation); observed error is ~1e-3.
    assert jnp.allclose(out, ref, atol=1e-2, rtol=1e-2), "mismatch vs reference"

    print("KERNEL_OK")
</pallas_src>

<mosaic_0001>
module attributes {stable_mosaic.version = 11 : i64} {
  func.func @image_encoder_kernel(%arg0: i32, %arg1: memref<8x64x32xf32, #tpu.memory_space<vmem>>, %arg2: memref<32x32xbf16, #tpu.memory_space<vmem>>, %arg3: memref<1x32xf32, #tpu.memory_space<vmem>>, %arg4: memref<8x32xf32, #tpu.memory_space<vmem>>) attributes {dimension_semantics = [#tpu.dimension_semantics<parallel>], iteration_bounds = array<i64: 2>, scalar_prefetch = 0 : i64, scratch_operands = 0 : i64, tpu.core_type = #tpu.core_type<tc>, window_params = [{transform_indices = @transform_0, window_bounds = array<i64: 8, 64, 32>}, {pipeline_mode = #tpu.pipeline_mode<synchronous>, transform_indices = @transform_1, window_bounds = array<i64: 32, 32>}, {pipeline_mode = #tpu.pipeline_mode<synchronous>, transform_indices = @transform_2, window_bounds = array<i64: 1, 32>}, {transform_indices = @transform_3, window_bounds = array<i64: 8, 32>}]} {
    %c0 = arith.constant 0 : index
    %c0_0 = arith.constant 0 : index
    %c0_1 = arith.constant 0 : index
    %0 = vector.load %arg1[%c0, %c0_0, %c0_1] : memref<8x64x32xf32, #tpu.memory_space<vmem>>, vector<8x64x32xf32>
    %cst = arith.constant dense<0.000000e+00> : vector<8x32xf32>
    %1 = vector.multi_reduction <add>, %0, %cst [1] : vector<8x64x32xf32> to vector<8x32xf32>
    %cst_2 = arith.constant 6.400000e+01 : f32
    %2 = vector.broadcast %cst_2 : f32 to vector<8x32xf32>
    %3 = arith.divf %1, %2 : vector<8x32xf32>
    %4 = arith.mulf %3, %3 : vector<8x32xf32>
    %cst_3 = arith.constant dense<0.000000e+00> : vector<8xf32>
    %5 = vector.multi_reduction <add>, %4, %cst_3 [1] : vector<8x32xf32> to vector<8xf32>
    %6 = vector.shape_cast %5 : vector<8xf32> to vector<8x1xf32>
    %cst_4 = arith.constant 1.000000e-24 : f32
    %7 = vector.broadcast %cst_4 : f32 to vector<8x1xf32>
    %8 = arith.maximumf %6, %7 : vector<8x1xf32>
    %9 = math.rsqrt %8 : vector<8x1xf32>
    %10 = vector.broadcast %9 : vector<8x1xf32> to vector<8x32xf32>
    %11 = arith.mulf %3, %10 : vector<8x32xf32>
    %12 = arith.truncf %11 : vector<8x32xf32> to vector<8x32xbf16>
    %c0_5 = arith.constant 0 : index
    %c0_6 = arith.constant 0 : index
    %13 = vector.load %arg2[%c0_5, %c0_6] : memref<32x32xbf16, #tpu.memory_space<vmem>>, vector<32x32xbf16>
    %cst_7 = arith.constant dense<0.000000e+00> : vector<8x32xf32>
    %14 = tpu.matmul %12, %13, %cst_7 {dimension_numbers = #tpu.dot_dimension_numbers<[1], [0], [0], [1], [0, 0, 1, 1], [], []>} : vector<8x32xbf16>, vector<32x32xbf16>, vector<8x32xf32> -> vector<8x32xf32>
    %c0_8 = arith.constant 0 : index
    %c0_9 = arith.constant 0 : index
    %15 = vector.load %arg3[%c0_8, %c0_9] : memref<1x32xf32, #tpu.memory_space<vmem>>, vector<1x32xf32>
    %16 = vector.broadcast %15 : vector<1x32xf32> to vector<8x32xf32>
    %17 = arith.addf %14, %16 : vector<8x32xf32>
    %18 = arith.mulf %17, %17 : vector<8x32xf32>
    %cst_10 = arith.constant dense<0.000000e+00> : vector<8xf32>
    %19 = vector.multi_reduction <add>, %18, %cst_10 [1] : vector<8x32xf32> to vector<8xf32>
    %20 = vector.shape_cast %19 : vector<8xf32> to vector<8x1xf32>
    %cst_11 = arith.constant 1.000000e-24 : f32
    %21 = vector.broadcast %cst_11 : f32 to vector<8x1xf32>
    %22 = arith.maximumf %20, %21 : vector<8x1xf32>
    %23 = math.rsqrt %22 : vector<8x1xf32>
    %24 = vector.broadcast %23 : vector<8x1xf32> to vector<8x32xf32>
    %25 = arith.mulf %17, %24 : vector<8x32xf32>
    %c0_12 = arith.constant 0 : index
    %c0_13 = arith.constant 0 : index
    %26 = vector.load %arg4[%c0_12, %c0_13] : memref<8x32xf32, #tpu.memory_space<vmem>>, vector<8x32xf32>
    tpu.vector_store %arg4[%c0_12, %c0_13], %25 {strides = array<i32>} : memref<8x32xf32, #tpu.memory_space<vmem>>, vector<8x32xf32>,
    return
  }
  func.func @transform_0(%arg0: i32) -> (i32, i32, i32) {
    %c0_i32 = arith.constant 0 : i32
    %c0_i32_0 = arith.constant 0 : i32
    %c0_i32_1 = arith.constant 0 : i32
    return %arg0, %c0_i32, %c0_i32_0 : i32, i32, i32
  }
  func.func @transform_1(%arg0: i32) -> (i32, i32) {
    %c0_i32 = arith.constant 0 : i32
    %c0_i32_0 = arith.constant 0 : i32
    %c0_i32_1 = arith.constant 0 : i32
    return %c0_i32, %c0_i32_0 : i32, i32
  }
  func.func @transform_2(%arg0: i32) -> (i32, i32) {
    %c0_i32 = arith.constant 0 : i32
    %c0_i32_0 = arith.constant 0 : i32
    %c0_i32_1 = arith.constant 0 : i32
    return %c0_i32, %c0_i32_0 : i32, i32
  }
  func.func @transform_3(%arg0: i32) -> (i32, i32) {
    %c0_i32 = arith.constant 0 : i32
    %c0_i32_0 = arith.constant 0 : i32
    return %arg0, %c0_i32 : i32, i32
  }
}

</mosaic_0001>

<llo_original>
// kernel: tpu_custom_call.1
$region0: #{tpu_custom_call.1}
  #allocation0 [shape = 'u32[]', space=smem, size = 0x4, offset = 0x4, fixed_abs, tag = 'smem constant byte address 0x4 - core index']
  #allocation1 [shape = 'u32[144,128]{1,0:T(1,128)}', space=vmem, size = 0x12000, scoped, tag = 'internal scratch']
  %s0 = inlined_call_operand.vmem [shape: f32[16,64,32], index: 0, kind: input, shape index: {}]
  %s1 = inlined_call_operand.vmem [shape: bf16[32,32], index: 1, kind: input, shape index: {}]
  %s2 = inlined_call_operand.vmem [shape: f32[1,32], index: 2, kind: input, shape index: {}]
  %s3 = inlined_call_operand.hbm [shape: f32[16,32], index: 3, kind: output, shape index: {}]
  %s4 = sld [smem:[#allocation0]]
  $region45: #{tpu_custom_call.1} parent=0
    _
  %s6 = ssub.s32 1, %s4
  %s7 = scalar_select 0, %s6, %s4
  $region1: #{tpu_custom_call.1} parent=0
    #allocation2 [shape = 'u8[8192]{0}', space=vmem, size = 0x2000, scoped, tag = 'output window, operand 0']
    #allocation3 [shape = 's32[2]{0}', space=sflag, size = 0x8, scoped, tag = 'scoped memory for tpu_custom_call.1']
    %8 = vsyncpa [#allocation3], 0
    %s9 = scalar_lea.sflag [#allocation3], 1
    %10 = vsyncpa %s9, 0
    loop: start=0, step=1, limit=4
    $region2: #{tpu_custom_call.1} parent=1 // loop_pre_header
      _
    $region3: #{tpu_custom_call.1} parent=1 // loop_header
      %s12 = sphi 0, %s16
      %p13 = scmp.ge.s32.totalorder %s12, 4
      %s22 = sphi 0, %s24
      %s25 = sphi 0, %s22
      %s26 = sphi 0, %s25
      %s42 = sphi 0, %s26
      %s46 = sphi 0, %s46
      %s48 = sphi 0, %s46
      %s49 = sphi 0, %s48
      %s63 = sphi 0, %s49
      %s67 = sphi 0, %s67
      %s69 = sphi 0, %s67
      %s70 = sphi 0, %s69
      %s84 = sphi 0, %s70
      %s90 = sphi 0, %s92
      %s93 = sphi 0, %s90
      %s94 = sphi 0, %s93
      %s110 = sphi 0, %s94
    $region4: #{tpu_custom_call.1} parent=1 // loop_header_branch
      %15 = sbr.rel (%p13) target = $region8
    $region5: #{tpu_custom_call.1} parent=1 // loop_body
      %s17 = ssub.s32 %s12, 1
      %s18 = ssub.s32 %s12, 2
      %s19 = sadd.s32 %s12, 1
      %s20 = ssub.s32 %s12, %s19
      %p21 = scmp.eq.s32.totalorder %s20, 0
      %s23 = sadd.s32 %s22, 1
      %s24 = scalar_select %p21, %s22, %s23
      %p27 = pneg %p21
      %p28 = scmp.eq.s32.totalorder %s12, 1
      %p29 = por %p27, %p28
      %p30 = scmp.ne.s32.totalorder %s22, %s25
      %p31 = scmp.eq.s32.totalorder %s12, 0
      %p32 = por %p30, %p31
      %p33 = scmp.ne.s32.totalorder %s22, %s25
      %p34 = scmp.eq.s32.totalorder %s17, 1
      %p35 = por %p33, %p34
      %p36 = scmp.ne.s32.totalorder %s25, %s26
      %p37 = scmp.eq.s32.totalorder %s17, 0
      %p38 = por %p36, %p37
      %p39 = scmp.ne.s32.totalorder %s25, %s26
      %p40 = scmp.eq.s32.totalorder %s18, 1
      %p41 = por %p39, %p40
      %p43 = scmp.ne.s32.totalorder %s26, %s42
      %p44 = scmp.eq.s32.totalorder %s18, 0
      %p45 = por %p43, %p44
      %s47 = sadd.s32 %s46, 1
      %p50 = scmp.eq.s32.totalorder %s12, 1
      %p51 = scmp.ne.s32.totalorder %s46, %s48
      %p52 = scmp.eq.s32.totalorder %s12, 0
      %p53 = por %p51, %p52
      %p54 = scmp.ne.s32.totalorder %s46, %s48
      %p55 = scmp.eq.s32.totalorder %s17, 1
      %p56 = por %p54, %p55
      %p57 = scmp.ne.s32.totalorder %s48, %s49
      %p58 = scmp.eq.s32.totalorder %s17, 0
      %p59 = por %p57, %p58
      %p60 = scmp.ne.s32.totalorder %s48, %s49
      %p61 = scmp.eq.s32.totalorder %s18, 1
      %p62 = por %p60, %p61
      %p64 = scmp.ne.s32.totalorder %s49, %s63
      %p65 = scmp.eq.s32.totalorder %s18, 0
      %p66 = por %p64, %p65
      %s68 = sadd.s32 %s67, 1
      %p71 = scmp.eq.s32.totalorder %s12, 1
      %p72 = scmp.ne.s32.totalorder %s67, %s69
      %p73 = scmp.eq.s32.totalorder %s12, 0
      %p74 = por %p72, %p73
      %p75 = scmp.ne.s32.totalorder %s67, %s69
      %p76 = scmp.eq.s32.totalorder %s17, 1
      %p77 = por %p75, %p76
      %p78 = scmp.ne.s32.totalorder %s69, %s70
      %p79 = scmp.eq.s32.totalorder %s17, 0
      %p80 = por %p78, %p79
      %p81 = scmp.ne.s32.totalorder %s69, %s70
      %p82 = scmp.eq.s32.totalorder %s18, 1
      %p83 = por %p81, %p82
      %p85 = scmp.ne.s32.totalorder %s70, %s84
      %p86 = scmp.eq.s32.totalorder %s18, 0
      %p87 = por %p85, %p86
      %s88 = ssub.s32 %s12, %s19
      %p89 = scmp.eq.s32.totalorder %s88, 0
      %s91 = sadd.s32 %s90, 1
      %s92 = scalar_select %p89, %s90, %s91
      %p95 = pneg %p89
      %p96 = scmp.eq.s32.totalorder %s12, 1
      %p97 = por %p95, %p96
      %p98 = scmp.ne.s32.totalorder %s90, %s93
      %p99 = scmp.eq.s32.totalorder %s12, 0
      %p100 = por %p98, %p99
      %p101 = scmp.ne.s32.totalorder %s90, %s93
      %p102 = scmp.eq.s32.totalorder %s17, 1
      %p103 = por %p101, %p102
      %p104 = scmp.ne.s32.totalorder %s93, %s94
      %p105 = scmp.eq.s32.totalorder %s17, 0
      %p106 = por %p104, %p105
      %p107 = scmp.ne.s32.totalorder %s93, %s94
      %p108 = scmp.eq.s32.totalorder %s18, 1
      %p109 = por %p107, %p108
      %p111 = scmp.ne.s32.totalorder %s94, %s110
      %p112 = scmp.eq.s32.totalorder %s18, 0
      %p113 = por %p111, %p112
      %p114 = scmp.le.s32.totalorder 1, %s12
      %p115 = scmp.lt.s32.totalorder %s12, 3
      %p116 = pnand %p114, %p115
      %p117 = pneg %p116
      // Predicated region
      $region9: #{tpu_custom_call.1} parent=5 // pred_check
        _
      $region10: #{tpu_custom_call.1} parent=5 // pred_check_branch
        %119 = sbr.rel (%p116) target = $region12
      $region11: #{tpu_custom_call.1} parent=5 // pred_region
        %s120 = ssub.s32 %s12, 1
        // Predicated region
        $region13: #{tpu_custom_call.1} parent=11 // pred_check
          %p121 = pneg %p59
        $region14: #{tpu_custom_call.1} parent=11 // pred_check_branch
          %123 = sbr.rel (%p121) target = $region16
        $region15: #{tpu_custom_call.1} parent=11 // pred_region
          _
        $region16: #{tpu_custom_call.1} parent=11 // pred_fallthru
          _
        // Predicated region
        $region17: #{tpu_custom_call.1} parent=11 // pred_check
          %p124 = pneg %p80
        $region18: #{tpu_custom_call.1} parent=11 // pred_check_branch
          %126 = sbr.rel (%p124) target = $region20
        $region19: #{tpu_custom_call.1} parent=11 // pred_region
          _
        $region20: #{tpu_custom_call.1} parent=11 // pred_fallthru
          _
      $region12: #{tpu_custom_call.1} parent=5 // pred_fallthru
        _
      %p127 = scmp.lt.s32.totalorder %s12, 2
      // Predicated region
      $region21: #{tpu_custom_call.1} parent=5 // pred_check
        %p128 = pneg %p127
      $region22: #{tpu_custom_call.1} parent=5 // pred_check_branch
        %130 = sbr.rel (%p128) target = $region24
      $region23: #{tpu_custom_call.1} parent=5 // pred_region
        // Predicated region
        $region25: #{tpu_custom_call.1} parent=23 // pred_check
          %p131 = pneg %p32
        $region26: #{tpu_custom_call.1} parent=23 // pred_check_branch
          %133 = sbr.rel (%p131) target = $region28
        $region27: #{tpu_custom_call.1} parent=23 // pred_region
          %s134 = smul.u32 8, %s12
          %p135 = scmp.lt.s32.totalorder %s134, 15
          %s136 = scalar_select %p135, %s134, 15
          %s137 = smul.addr %s136, 8
          %s138 = smul.addr %s137, 8
          %s139 = scalar_lea.vmem %s0, %s138
          %s140 = smul.u32 8, %s12
        $region28: #{tpu_custom_call.1} parent=23 // pred_fallthru
          _
      $region24: #{tpu_custom_call.1} parent=5 // pred_fallthru
        _
      %p141 = scmp.le.s32.totalorder 1, %s12
      %p142 = scmp.lt.s32.totalorder %s12, 3
      %p143 = pnand %p141, %p142
      %p144 = pneg %p143
      // Predicated region
      $region29: #{tpu_custom_call.1} parent=5 // pred_check
        _
      $region30: #{tpu_custom_call.1} parent=5 // pred_check_branch
        %146 = sbr.rel (%p143) target = $region32
      $region31: #{tpu_custom_call.1} parent=5 // pred_region
        %s147 = ssub.s32 %s12, 1
        %s148 = smul.u32 8, %s17
        %p149 = scmp.lt.s32.totalorder %s148, 15
        %s150 = scalar_select %p149, %s148, 15
        %s151 = smul.addr %s150, 8
        %s152 = smul.addr %s151, 8
        %s153 = scalar_lea.vmem %s0, %s152
        %p154 = pneg %p38
        %p155 = pneg %p35
        %p156 = pneg %p59
        %p157 = pneg %p56
        %p158 = pneg %p80
        %p159 = pneg %p77
        %p160 = pneg %p106
        %p161 = pneg %p103
        %s162 = sand.u32 %s93, 1
        %s163 = scalar_lea.sflag [#allocation3], %s162
        %s164 = sand.u32 %s93, 1
        %s165 = smul.addr %s164, 8
        %s166 = scalar_lea.vmem [#allocation2], %s165
        %s167 = smul.u32 8, %s17
        %p168 = scmp.lt.s32.totalorder %s167, 15
        %s169 = scalar_select %p168, %s167, 15
        %s170 = smul.addr %s169, 8
        %s171 = smul.addr %s170, 8
        %s172 = scalar_lea.vmem %s0, %s171
        %s173 = smul.u32 8, %s17
        %v175 = vld [vmem:[%s172] sm:$0xff]
        %v176 = vld [vmem:[%s172 + $0x8] sm:$0xff]
        %v177 = vld [vmem:[%s172 + $0x10] sm:$0xff]
        %v178 = vld [vmem:[%s172 + $0x18] sm:$0xff]
        %v179 = vld [vmem:[%s172 + $0x20] sm:$0xff]
        %v180 = vld [vmem:[%s172 + $0x28] sm:$0xff]
        %v181 = vld [vmem:[%s172 + $0x30] sm:$0xff]
        %v182 = vld [vmem:[%s172 + $0x38] sm:$0xff]
        %v183 = vld [vmem:[%s172 + $0x40] sm:$0xff]
        %v184 = vld [vmem:[%s172 + $0x48] sm:$0xff]
        %v185 = vld [vmem:[%s172 + $0x50] sm:$0xff]
        %v186 = vld [vmem:[%s172 + $0x58] sm:$0xff]
        %v187 = vld [vmem:[%s172 + $0x60] sm:$0xff]
        %v188 = vld [vmem:[%s172 + $0x68] sm:$0xff]
        %v189 = vld [vmem:[%s172 + $0x70] sm:$0xff]
        %v190 = vld [vmem:[%s172 + $0x78] sm:$0xff]
        %v191 = vld [vmem:[%s172 + $0x80] sm:$0xff]
        %v192 = vld [vmem:[%s172 + $0x88] sm:$0xff]
        %v193 = vld [vmem:[%s172 + $0x90] sm:$0xff]
        %v194 = vld [vmem:[%s172 + $0x98] sm:$0xff]
        %v195 = vld [vmem:[%s172 + $0xa0] sm:$0xff]
        %v196 = vld [vmem:[%s172 + $0xa8] sm:$0xff]
        %v197 = vld [vmem:[%s172 + $0xb0] sm:$0xff]
        %v198 = vld [vmem:[%s172 + $0xb8] sm:$0xff]
        %v199 = vld [vmem:[%s172 + $0xc0] sm:$0xff]
        %v200 = vld [vmem:[%s172 + $0xc8] sm:$0xff]
        %v201 = vld [vmem:[%s172 + $0xd0] sm:$0xff]
        %v202 = vld [vmem:[%s172 + $0xd8] sm:$0xff]
        %v203 = vld [vmem:[%s172 + $0xe0] sm:$0xff]
        %v204 = vld [vmem:[%s172 + $0xe8] sm:$0xff]
        %v205 = vld [vmem:[%s172 + $0xf0] sm:$0xff]
        %v206 = vld [vmem:[%s172 + $0xf8] sm:$0xff]
        %v207 = vld [vmem:[%s172 + $0x100] sm:$0xff]
        %v208 = vld [vmem:[%s172 + $0x108] sm:$0xff]
        %v209 = vld [vmem:[%s172 + $0x110] sm:$0xff]
        %v210 = vld [vmem:[%s172 + $0x118] sm:$0xff]
        %v211 = vld [vmem:[%s172 + $0x120] sm:$0xff]
        %v212 = vld [vmem:[%s172 + $0x128] sm:$0xff]
        %v213 = vld [vmem:[%s172 + $0x130] sm:$0xff]
        %v214 = vld [vmem:[%s172 + $0x138] sm:$0xff]
        %v215 = vld [vmem:[%s172 + $0x140] sm:$0xff]
        %v216 = vld [vmem:[%s172 + $0x148] sm:$0xff]
        %v217 = vld [vmem:[%s172 + $0x150] sm:$0xff]
        %v218 = vld [vmem:[%s172 + $0x158] sm:$0xff]
        %v219 = vld [vmem:[%s172 + $0x160] sm:$0xff]
        %v220 = vld [vmem:[%s172 + $0x168] sm:$0xff]
        %v221 = vld [vmem:[%s172 + $0x170] sm:$0xff]
        %v222 = vld [vmem:[%s172 + $0x178] sm:$0xff]
        %v223 = vld [vmem:[%s172 + $0x180] sm:$0xff]
        %v224 = vld [vmem:[%s172 + $0x188] sm:$0xff]
        %v225 = vld [vmem:[%s172 + $0x190] sm:$0xff]
        %v226 = vld [vmem:[%s172 + $0x198] sm:$0xff]
        %v227 = vld [vmem:[%s172 + $0x1a0] sm:$0xff]
        %v228 = vld [vmem:[%s172 + $0x1a8] sm:$0xff]
        %v229 = vld [vmem:[%s172 + $0x1b0] sm:$0xff]
        %v230 = vld [vmem:[%s172 + $0x1b8] sm:$0xff]
        %v231 = vld [vmem:[%s172 + $0x1c0] sm:$0xff]
        %v232 = vld [vmem:[%s172 + $0x1c8] sm:$0xff]
        %v233 = vld [vmem:[%s172 + $0x1d0] sm:$0xff]
        %v234 = vld [vmem:[%s172 + $0x1d8] sm:$0xff]
        %v235 = vld [vmem:[%s172 + $0x1e0] sm:$0xff]
        %v236 = vld [vmem:[%s172 + $0x1e8] sm:$0xff]
        %v237 = vld [vmem:[%s172 + $0x1f0] sm:$0xff]
        %v238 = vld [vmem:[%s172 + $0x1f8] sm:$0xff]
        %vm239 = vcmask 261120
        %v240 = vsel %vm239, %v175, 0.0
        %v241 = vsel %vm239, %v176, 0.0
        %v242 = vadd.f32 %v240, %v241
        %v243 = vsel %vm239, %v177, 0.0
        %v244 = vadd.f32 %v242, %v243
        %v245 = vsel %vm239, %v178, 0.0
        %v246 = vadd.f32 %v244, %v245
        %v247 = vsel %vm239, %v179, 0.0
        %v248 = vadd.f32 %v246, %v247
        %v249 = vsel %vm239, %v180, 0.0
        %v250 = vadd.f32 %v248, %v249
        %v251 = vsel %vm239, %v181, 0.0
        %v252 = vadd.f32 %v250, %v251
        %v253 = vsel %vm239, %v182, 0.0
        %v254 = vadd.f32 %v252, %v253
        %v255 = vrot.slane %v254, 4
        %v256 = vadd.f32 %v254, %v255
        %v257 = vrot.slane %v256, 2
        %v258 = vadd.f32 %v256, %v257
        %v259 = vrot.slane %v258, 1
        %v260 = vadd.f32 %v258, %v259
        %v261 = vsel %vm239, %v183, 0.0
        %v262 = vsel %vm239, %v184, 0.0
        %v263 = vadd.f32 %v261, %v262
        %v264 = vsel %vm239, %v185, 0.0
        %v265 = vadd.f32 %v263, %v264
        %v266 = vsel %vm239, %v186, 0.0
        %v267 = vadd.f32 %v265, %v266
        %v268 = vsel %vm239, %v187, 0.0
        %v269 = vadd.f32 %v267, %v268
        %v270 = vsel %vm239, %v188, 0.0
        %v271 = vadd.f32 %v269, %v270
        %v272 = vsel %vm239, %v189, 0.0
        %v273 = vadd.f32 %v271, %v272
        %v274 = vsel %vm239, %v190, 0.0
        %v275 = vadd.f32 %v273, %v274
        %v276 = vrot.slane %v275, 4
        %v277 = vadd.f32 %v275, %v276
        %v278 = vrot.slane %v277, 2
        %v279 = vadd.f32 %v277, %v278
        %v280 = vrot.slane %v279, 1
        %v281 = vadd.f32 %v279, %v280
        %v282 = vsel %vm239, %v191, 0.0
        %v283 = vsel %vm239, %v192, 0.0
        %v284 = vadd.f32 %v282, %v283
        %v285 = vsel %vm239, %v193, 0.0
        %v286 = vadd.f32 %v284, %v285
        %v287 = vsel %vm239, %v194, 0.0
        %v288 = vadd.f32 %v286, %v287
        %v289 = vsel %vm239, %v195, 0.0
        %v290 = vadd.f32 %v288, %v289
        %v291 = vsel %vm239, %v196, 0.0
        %v292 = vadd.f32 %v290, %v291
        %v293 = vsel %vm239, %v197, 0.0
        %v294 = vadd.f32 %v292, %v293
        %v295 = vsel %vm239, %v198, 0.0
        %v296 = vadd.f32 %v294, %v295
        %v297 = vrot.slane %v296, 4
        %v298 = vadd.f32 %v296, %v297
        %v299 = vrot.slane %v298, 2
        %v300 = vadd.f32 %v298, %v299
        %v301 = vrot.slane %v300, 1
        %v302 = vadd.f32 %v300, %v301
        %v303 = vsel %vm239, %v199, 0.0
        %v304 = vsel %vm239, %v200, 0.0
        %v305 = vadd.f32 %v303, %v304
        %v306 = vsel %vm239, %v201, 0.0
        %v307 = vadd.f32 %v305, %v306
        %v308 = vsel %vm239, %v202, 0.0
        %v309 = vadd.f32 %v307, %v308
        %v310 = vsel %vm239, %v203, 0.0
        %v311 = vadd.f32 %v309, %v310
        %v312 = vsel %vm239, %v204, 0.0
        %v313 = vadd.f32 %v311, %v312
        %v314 = vsel %vm239, %v205, 0.0
        %v315 = vadd.f32 %v313, %v314
        %v316 = vsel %vm239, %v206, 0.0
        %v317 = vadd.f32 %v315, %v316
        %v318 = vrot.slane %v317, 4
        %v319 = vadd.f32 %v317, %v318
        %v320 = vrot.slane %v319, 2
        %v321 = vadd.f32 %v319, %v320
        %v322 = vrot.slane %v321, 1
        %v323 = vadd.f32 %v321, %v322
        %v324 = vsel %vm239, %v207, 0.0
        %v325 = vsel %vm239, %v208, 0.0
        %v326 = vadd.f32 %v324, %v325
        %v327 = vsel %vm239, %v209, 0.0
        %v328 = vadd.f32 %v326, %v327
        %v329 = vsel %vm239, %v210, 0.0
        %v330 = vadd.f32 %v328, %v329
        %v331 = vsel %vm239, %v211, 0.0
        %v332 = vadd.f32 %v330, %v331
        %v333 = vsel %vm239, %v212, 0.0
        %v334 = vadd.f32 %v332, %v333
        %v335 = vsel %vm239, %v213, 0.0
        %v336 = vadd.f32 %v334, %v335
        %v337 = vsel %vm239, %v214, 0.0
        %v338 = vadd.f32 %v336, %v337
        %v339 = vrot.slane %v338, 4
        %v340 = vadd.f32 %v338, %v339
        %v341 = vrot.slane %v340, 2
        %v342 = vadd.f32 %v340, %v341
        %v343 = vrot.slane %v342, 1
        %v344 = vadd.f32 %v342, %v343
        %v345 = vsel %vm239, %v215, 0.0
        %v346 = vsel %vm239, %v216, 0.0
        %v347 = vadd.f32 %v345, %v346
        %v348 = vsel %vm239, %v217, 0.0
        %v349 = vadd.f32 %v347, %v348
        %v350 = vsel %vm239, %v218, 0.0
        %v351 = vadd.f32 %v349, %v350
        %v352 = vsel %vm239, %v219, 0.0
        %v353 = vadd.f32 %v351, %v352
        %v354 = vsel %vm239, %v220, 0.0
        %v355 = vadd.f32 %v353, %v354
        %v356 = vsel %vm239, %v221, 0.0
        %v357 = vadd.f32 %v355, %v356
        %v358 = vsel %vm239, %v222, 0.0
        %v359 = vadd.f32 %v357, %v358
        %v360 = vrot.slane %v359, 4
        %v361 = vadd.f32 %v359, %v360
        %v362 = vrot.slane %v361, 2
        %v363 = vadd.f32 %v361, %v362
        %v364 = vrot.slane %v363, 1
        %v365 = vadd.f32 %v363, %v364
        %v366 = vsel %vm239, %v223, 0.0
        %v367 = vsel %vm239, %v224, 0.0
        %v368 = vadd.f32 %v366, %v367
        %v369 = vsel %vm239, %v225, 0.0
        %v370 = vadd.f32 %v368, %v369
        %v371 = vsel %vm239, %v226, 0.0
        %v372 = vadd.f32 %v370, %v371
        %v373 = vsel %vm239, %v227, 0.0
        %v374 = vadd.f32 %v372, %v373
        %v375 = vsel %vm239, %v228, 0.0
        %v376 = vadd.f32 %v374, %v375
        %v377 = vsel %vm239, %v229, 0.0
        %v378 = vadd.f32 %v376, %v377
        %v379 = vsel %vm239, %v230, 0.0
        %v380 = vadd.f32 %v378, %v379
        %v381 = vrot.slane %v380, 4
        %v382 = vadd.f32 %v380, %v381
        %v383 = vrot.slane %v382, 2
        %v384 = vadd.f32 %v382, %v383
        %v385 = vrot.slane %v384, 1
        %v386 = vadd.f32 %v384, %v385
        %v387 = vsel %vm239, %v231, 0.0
        %v388 = vsel %vm239, %v232, 0.0
        %v389 = vadd.f32 %v387, %v388
        %v390 = vsel %vm239, %v233, 0.0
        %v391 = vadd.f32 %v389, %v390
        %v392 = vsel %vm239, %v234, 0.0
        %v393 = vadd.f32 %v391, %v392
        %v394 = vsel %vm239, %v235, 0.0
        %v395 = vadd.f32 %v393, %v394
        %v396 = vsel %vm239, %v236, 0.0
        %v397 = vadd.f32 %v395, %v396
        %v398 = vsel %vm239, %v237, 0.0
        %v399 = vadd.f32 %v397, %v398
        %v400 = vsel %vm239, %v238, 0.0
        %v401 = vadd.f32 %v399, %v400
        %v402 = vrot.slane %v401, 4
        %v403 = vadd.f32 %v401, %v402
        %v404 = vrot.slane %v403, 2
        %v405 = vadd.f32 %v403, %v404
        %v406 = vrot.slane %v405, 1
        %v407 = vadd.f32 %v405, %v406
        %v408 = vrcp.pop 64.0
        %v409 = vmul.f32 %v260, %v408
        %v410 = vmul.f32 %v281, %v408
        %v411 = vmul.f32 %v302, %v408
        %v412 = vmul.f32 %v323, %v408
        %v413 = vmul.f32 %v344, %v408
        %v414 = vmul.f32 %v365, %v408
        %v415 = vmul.f32 %v386, %v408
        %v416 = vmul.f32 %v407, %v408
        %v417 = vmul.f32 %v409, %v409
        %v418 = vmul.f32 %v410, %v410
        %v419 = vmul.f32 %v411, %v411
        %v420 = vmul.f32 %v412, %v412
        %v421 = vmul.f32 %v413, %v413
        %v422 = vmul.f32 %v414, %v414
        %v423 = vmul.f32 %v415, %v415
        %v424 = vmul.f32 %v416, %v416
        %vm433 = vcmask 1041409
        %v434 = vsel %vm433, %v418, %v417
        %vm435 = vcmask 1042434
        %v436 = vsel %vm435, %v419, %v434
        %vm437 = vcmask 1043459
        %v438 = vsel %vm437, %v420, %v436
        %vm439 = vcmask 1044484
        %v440 = vsel %vm439, %v421, %v438
        %vm441 = vcmask 1045509
        %v442 = vsel %vm441, %v422, %v440
        %vm443 = vcmask 1046534
        %v444 = vsel %vm443, %v423, %v442
        %vm445 = vcmask 1047559
        %v446 = vsel %vm445, %v424, %v444
        %v448 = vsel %vm239, %v446, 0.0
        %449 = vadd.xlane.f32.xlu0 %v448
        %v450 = vpop.xlane.xlu0 %449
        %v451 = vmax.f32 %v450, 1e-24
        %v452 = vrsqrt.pop %v451
        %v454 = vrot.slane %v452, 1
        %v455 = vrot.slane %v452, 2
        %v456 = vrot.slane %v452, 3
        %v457 = vrot.slane %v452, 4
        %v458 = vrot.slane %v452, 5
        %v459 = vrot.slane %v452, 6
        %v460 = vrot.slane %v452, 7
        %v469 = vmul.f32 %v409, %v452
        %v470 = vmul.f32 %v410, %v454
        %v471 = vmul.f32 %v411, %v455
        %v472 = vmul.f32 %v412, %v456
        %v473 = vmul.f32 %v413, %v457
        %v474 = vmul.f32 %v414, %v458
        %v475 = vmul.f32 %v415, %v459
        %v476 = vmul.f32 %v416, %v460
        %v477 = vpack.c.bf16 %v469, %v469
        %v478 = vpack.c.bf16 %v470, %v470
        %v479 = vpack.c.bf16 %v471, %v471
        %v480 = vpack.c.bf16 %v472, %v472
        %v481 = vpack.c.bf16 %v473, %v473
        %v482 = vpack.c.bf16 %v474, %v474
        %v483 = vpack.c.bf16 %v475, %v475
        %v484 = vpack.c.bf16 %v476, %v476
        %v485 = vld [vmem:[%s1] sm:$0xf]
        %v486 = vld [vmem:[%s1 + $0x4] sm:$0xf]
        %v487 = vld [vmem:[%s1 + $0x8] sm:$0xf]
        %v488 = vld [vmem:[%s1 + $0xc] sm:$0xf]
        %v489 = vld [vmem:[%s2] sm:$0x1]
        %v491 = vlaneseq
        %v492 = vshrl.u32 %v491, 7
        %v493 = vsub.s32 0, %v492
        %v494 = vrot.slane %v489, %v493
        %v504 = vunpack.c.l.b16 %v477
        %v505 = vunpack.c.l.b16 %v478
        %v506 = vunpack.c.l.b16 %v479
        %v507 = vunpack.c.l.b16 %v480
        %v508 = vunpack.c.l.b16 %v481
        %v509 = vunpack.c.l.b16 %v482
        %v510 = vunpack.c.l.b16 %v483
        %v511 = vunpack.c.l.b16 %v484
        %v512 = vrot.slane %v505, 7
        %v513 = vsel %vm433, %v512, %v504
        %v514 = vrot.slane %v506, 6
        %v515 = vsel %vm435, %v514, %v513
        %v516 = vrot.slane %v507, 5
        %v517 = vsel %vm437, %v516, %v515
        %v518 = vrot.slane %v508, 4
        %v519 = vsel %vm439, %v518, %v517
        %v520 = vrot.slane %v509, 3
        %v521 = vsel %vm441, %v520, %v519
        %v522 = vrot.slane %v510, 2
        %v523 = vsel %vm443, %v522, %v521
        %v524 = vrot.slane %v511, 1
        %v525 = vsel %vm445, %v524, %v523
        %v526 = vpack.c.b16 %v525, %v525
        %v531 = vunpack.c.l.b16 %v485
        %v532 = vunpack.c.l.b16 %v486
        %v533 = vunpack.c.l.b16 %v487
        %v534 = vunpack.c.l.b16 %v488
        %v535 = vpack.c.b16 %v532, %v531
        %v536 = vpack.c.b16 %v534, %v533
        %v540 = vsel %vm239, %v526, 0
        %542 = vmatprep.subr.bf16.mxu0 0
        %543 = vmatpush1.bf16.msra.mxu0 %v535
        %544 = vmatprep.subr.bf16.mxu0 0
        %545 = vmatpush1.bf16.msra.mxu0 %v536
        %546 = vmatprep.subr.bf16.mxu0 0
        %547 = vmatpush1.bf16.msra.mxu0 0
        %548 = vmatprep.subr.bf16.mxu0 0
        %549 = vmatpush1.bf16.msra.mxu0 0
        %550 = vmatprep.subr.bf16.mxu0 0
        %551 = vmatpush1.bf16.msra.mxu0 0
        %552 = vmatprep.subr.bf16.mxu0 0
        %553 = vmatpush1.bf16.msra.mxu0 0
        %554 = vmatprep.subr.bf16.mxu0 0
        %555 = vmatpush1.bf16.msra.mxu0 0
        %556 = vmatprep.subr.bf16.mxu0 0
        %557 = vmatpush1.bf16.msra.mxu0 0
        %558 = vmatprep.subr.bf16.mxu0 0
        %559 = vmatpush1.bf16.msra.mxu0 0
        %560 = vmatprep.subr.bf16.mxu0 0
        %561 = vmatpush1.bf16.msra.mxu0 0
        %562 = vmatprep.subr.bf16.mxu0 0
        %563 = vmatpush1.bf16.msra.mxu0 0
        %564 = vmatprep.subr.bf16.mxu0 0
        %565 = vmatpush1.bf16.msra.mxu0 0
        %566 = vmatprep.subr.bf16.mxu0 0
        %567 = vmatpush1.bf16.msra.mxu0 0
        %568 = vmatprep.subr.bf16.mxu0 0
        %569 = vmatpush1.bf16.msra.mxu0 0
        %570 = vmatprep.subr.bf16.mxu0 0
        %571 = vmatpush1.bf16.msra.mxu0 0
        %572 = vmatprep.subr.bf16.mxu0 0
        %573 = vmatpush1.bf16.msra.mxu0 0
        %574 = vmatprep.mubr.bf16.mxu0 0
        %575 = vmatmul.mubr.bf16.gmra.mrb[0].mxu0 %v540
        %v576 = vpop.f32.mrb[0].mxu0
        %v577 = vadd.f32 %v494, %v576
        %v578 = vpop.f32.mrb[0].mxu0
        %v579 = vpop.f32.mrb[0].mxu0
        %v580 = vpop.f32.mrb[0].mxu0
        %581 = vdwg.mxu0
        %v582 = vmul.f32 %v577, %v577
        %v583 = vsel %vm239, %v582, 0.0
        %584 = vadd.xlane.f32.xlu0 %v583
        %v585 = vpop.xlane.xlu0 %584
        %v586 = vmax.f32 %v585, 1e-24
        %v587 = vrsqrt.pop %v586
        %v588 = vmul.f32 %v577, %v587
        %589 = vst.msk [vmem:[%s166] sm:$0xff] %vm239, %v588
        %s590 = sand.u32 %s93, 1
        %s591 = scalar_lea.sflag [#allocation3], %s590
        %s592 = sand.u32 %s93, 1
        %s593 = smul.addr %s592, 8
        %s594 = scalar_lea.vmem [#allocation2], %s593
        // Predicated region
        $region33: #{tpu_custom_call.1} parent=31 // pred_check
          %p595 = pneg %p103
        $region34: #{tpu_custom_call.1} parent=31 // pred_check_branch
          %597 = sbr.rel (%p595) target = $region36
        $region35: #{tpu_custom_call.1} parent=31 // pred_region
          %s599 = ssub.s32 128, 128
          %600 = vsyncadd %s591, %s599
          %s601 = smul.addr %s17, 128
          %s602 = scalar_lea.hbm %s3, %s601
          %s604 = sshll.u32 %s594, 4
          %s605 = int_to_ptr.vmem [resolvable:$true] %s604
          %607 = dma.vmem_to_hbm [thread:$0]  %s605, 128, %s602, %s591
        $region36: #{tpu_custom_call.1} parent=31 // pred_fallthru
          _
      $region32: #{tpu_custom_call.1} parent=5 // pred_fallthru
        _
      %p608 = scmp.le.s32.totalorder 2, %s12
      // Predicated region
      $region37: #{tpu_custom_call.1} parent=5 // pred_check
        %p609 = pneg %p608
      $region38: #{tpu_custom_call.1} parent=5 // pred_check_branch
        %611 = sbr.rel (%p609) target = $region40
      $region39: #{tpu_custom_call.1} parent=5 // pred_region
        %s612 = ssub.s32 %s12, 2
        // Predicated region
        $region41: #{tpu_custom_call.1} parent=39 // pred_check
          %p613 = pneg %p109
        $region42: #{tpu_custom_call.1} parent=39 // pred_check_branch
          %615 = sbr.rel (%p613) target = $region44
        $region43: #{tpu_custom_call.1} parent=39 // pred_region
          %s616 = sand.u32 %s94, 1
          %s617 = scalar_lea.sflag [#allocation3], %s616
          %s618 = sand.u32 %s94, 1
          %s619 = smul.addr %s618, 8
          %s620 = scalar_lea.vmem [#allocation2], %s619
          %621 = dma.done %s617, 128
        $region44: #{tpu_custom_call.1} parent=39 // pred_fallthru
          _
      $region40: #{tpu_custom_call.1} parent=5 // pred_fallthru
        _
    $region6: #{tpu_custom_call.1} parent=1 // loop_footer
      %s16 = sadd.s32 1, %s12
    $region7: #{tpu_custom_call.1} parent=1 // loop_footer_branch
      %11 = sbr.rel target = $region3
    $region8: #{tpu_custom_call.1} parent=1 // loop_exit
      _
    %622 = vsyncpa [#allocation3], 1
    %s623 = scalar_lea.sflag [#allocation3], 1
    %624 = vsyncpa %s623, 1

</llo_original>
